<compile_context>
chip_gen: v7x
topology: tpu7x:2x2x1
jax: 0.10.0
libtpu: 0.0.40
codegen_flags: <defaults>
</compile_context>

<pallas_src>
import jax
import jax.numpy as jnp
from jax.experimental import pallas as pl
from jax.experimental.pallas import tpu as pltpu

KERNEL_SIZE = 15
PADDING = 3
STRIDE = 10
_LANE = 128


def _fused_dsconv_kernel(a_main_ref, a_halo_ref, w0_ref, w1m_ref, w1h_ref, o_ref):
    # a_main_ref: (S, L_tile)       row s*C_in+ci, col j -> x_pad[ci, (l0+j)*stride + s]
    # a_halo_ref: (halo_rows, 128)  first column = column (l0+L_tile) of A
    # w0_ref    : (C_out, S)        fused weights, taps 0..stride-1
    # w1m_ref   : (C_out, S)        fused weights, taps stride..K-1, zero-padded to S rows
    # w1h_ref   : (C_out, halo_rows) same taps, zero-padded to the halo row count
    # o_ref     : (C_out, L_tile)
    a_main = a_main_ref[...]
    lt = a_main.shape[1]

    # taps 0..stride-1: one fused MXU matmul over the whole tile (f32 accumulate)
    acc = jnp.dot(w0_ref[...], a_main, preferred_element_type=jnp.float32)

    # taps stride..K-1 read the *next* A column.  Matmul against the unshifted
    # slab, then rotate the small (C_out, L_tile) result left by one lane on the
    # XLU (shift = lt-1 == -1 mod lt).  Zero weight rows make rows >= S5 inert.
    y1 = jnp.dot(w1m_ref[...], a_main, preferred_element_type=jnp.float32)
    y1 = pltpu.roll(y1, shift=lt - 1, axis=1)

    # The wrapped column (j == lt-1) must come from the halo block instead.
    y_halo = jnp.dot(w1h_ref[...], a_halo_ref[...],
                     preferred_element_type=jnp.float32)      # (C_out, 128)
    col = jax.lax.broadcasted_iota(jnp.int32, acc.shape, 1)
    y1 = jnp.where(col == lt - 1, y_halo[:, :1], y1)

    o_ref[...] = (acc + y1).astype(o_ref.dtype)


def _round_up(x, m):
    return (x + m - 1) // m * m


def _vmem_capacity_bytes():
    try:
        return int(pltpu.get_tpu_info().vmem_capacity_bytes)
    except Exception:
        return 64 * 1024 * 1024  # conservative: v7x per-TensorCore VMEM


def _pick_l_tile(l_out, batch, s_rows, halo_rows, c_out, itemsize, vmem_budget):
    """Largest 128-multiple L tile whose working set fits the budget and which
    keeps at least 2 grid programs (so a 2-TensorCore chip can split the grid)."""
    cap = max(_LANE, _round_up(l_out, _LANE))
    best = _LANE
    for cand in (8192, 4096, 2048, 1024, 512, 256, 128):
        cand = min(cand, cap)
        need = (
            itemsize * (
                2 * s_rows * cand                       # main A tile, double buffered
                + 2 * halo_rows * _LANE                 # halo tile, double buffered
                + 2 * c_out * cand                      # output tile, double buffered
                + 2 * c_out * (2 * s_rows + halo_rows)  # fused weights
            )
            + 4 * (3 * c_out * cand + s_rows * cand)    # f32 temporaries headroom
        )
        if need > vmem_budget:
            continue
        if cand > _LANE and batch * pl.cdiv(l_out, cand) < 2:
            continue                                    # keep >= 2 programs (megacore)
        best = cand
        break
    return best


def downsample_layer(x, w_depthwise, w_pointwise,
                     kernel_size=KERNEL_SIZE, padding=PADDING, stride=STRIDE,
                     l_tile=None):
    """Depthwise-separable strided Conv1d (bias=False), NCW layout.

    x            : (B, C_in, T)
    w_depthwise  : (C_in, 1, K)      PyTorch depthwise Conv1d weight (groups=C_in)
    w_pointwise  : (C_out, C_in, 1)  PyTorch pointwise (1x1) Conv1d weight
    returns      : (B, C_out, L_out), L_out = (T + 2*pad - K)//stride + 1
    """
    B, C_in, T = x.shape
    C_out = w_pointwise.shape[0]
    K = kernel_size
    # TODO(synk): the 2-phase decomposition assumes stride < K <= 2*stride (true
    # for the module defaults K=15, stride=10); other configs need more phase terms.
    assert stride < K <= 2 * stride, "kernel assumes stride < K <= 2*stride"
    L_out = (T + 2 * padding - K) // stride + 1
    assert L_out >= 1, "input too short for this conv configuration"

    S = stride * C_in                      # rows of the stride-phase matrix A
    S5 = (K - stride) * C_in               # rows feeding the shifted term
    halo_rows = min(_round_up(S5, 8), S)   # sublane-aligned halo row count

    # Generation-aware VMEM sizing (v5e/v6e: 128 MiB physical, v7x: 64 MiB per TC).
    vmem_cap = _vmem_capacity_bytes()
    if vmem_cap >= 100 * 1024 * 1024:
        picker_budget, vmem_limit = 48 * 1024 * 1024, 64 * 1024 * 1024
    else:
        picker_budget, vmem_limit = 24 * 1024 * 1024, 40 * 1024 * 1024

    if l_tile is None:
        l_tile = _pick_l_tile(L_out, B, S, halo_rows, C_out, x.dtype.itemsize,
                              picker_budget)
    assert l_tile % _LANE == 0, "l_tile must be a multiple of 128"

    n_l = pl.cdiv(L_out, l_tile)
    L_padded = n_l * l_tile
    L_A = L_padded + _LANE                 # +128 cols so every halo block is in-bounds

    # ---- layout prep: pure permutation, no K-fold im2col expansion in HBM ----
    # TODO(synk): fold this phase permutation into the producer of x (or fuse it
    # into the pallas_call); it is the one remaining extra HBM read+write of x.
    w_total = L_A * stride
    x_pad = jnp.pad(x, ((0, 0), (0, 0), (padding, w_total - T - padding)))
    a = x_pad.reshape(B, C_in, L_A, stride)
    a = jnp.transpose(a, (0, 3, 1, 2)).reshape(B, S, L_A)

    # ---- fuse depthwise + pointwise into small weight matrices ----
    wdw = w_depthwise[:, 0, :]             # (C_in, K)
    wpw = w_pointwise[:, :, 0]             # (C_out, C_in)
    w0 = (wpw[:, None, :] * wdw.T[None, :stride, :]).reshape(C_out, S).astype(x.dtype)
    w1 = (wpw[:, None, :] * wdw.T[None, stride:K, :]).reshape(C_out, S5).astype(x.dtype)
    # zero-pad the contraction dim so the kernel never slices sublanes
    w1m = jnp.zeros((C_out, S), x.dtype).at[:, :S5].set(w1)
    w1h = jnp.zeros((C_out, halo_rows), x.dtype).at[:, :S5].set(w1)

    itemsize = x.dtype.itemsize
    flops = 2 * B * n_l * C_out * (2 * S * l_tile + halo_rows * _LANE)
    bytes_accessed = itemsize * (
        B * n_l * (S * l_tile + halo_rows * _LANE)     # main A tiles + halo tiles
        + C_out * (2 * S + halo_rows)                  # fused weights
        + B * C_out * L_out)                           # output

    lane_blocks_per_tile = l_tile // _LANE

    out = pl.pallas_call(
        _fused_dsconv_kernel,
        out_shape=jax.ShapeDtypeStruct((B, C_out, L_out), x.dtype),
        grid_spec=pltpu.PrefetchScalarGridSpec(
            num_scalar_prefetch=0,
            grid=(B, n_l),
            in_specs=[
                # main A tile for this (batch, L-tile)
                pl.BlockSpec((pl.Squeezed(), S, l_tile),
                             lambda b, l: (b, 0, l)),
                # halo: 128-wide block whose first column is A[:, (l+1)*l_tile];
                # only the sublane-aligned rows the shifted taps actually read
                pl.BlockSpec((pl.Squeezed(), halo_rows, _LANE),
                             lambda b, l: (b, 0, (l + 1) * lane_blocks_per_tile)),
                # fused weights (constant index_map -> fetched once, kept resident)
                pl.BlockSpec((C_out, S), lambda b, l: (0, 0)),
                pl.BlockSpec((C_out, S), lambda b, l: (0, 0)),
                pl.BlockSpec((C_out, halo_rows), lambda b, l: (0, 0)),
            ],
            # output is exactly (B, C_out, L_out); Pallas masks the ragged last block
            out_specs=pl.BlockSpec((pl.Squeezed(), C_out, l_tile),
                                   lambda b, l: (b, 0, l)),
        ),
        compiler_params=pltpu.CompilerParams(
            dimension_semantics=("parallel", "parallel"),
            vmem_limit_bytes=vmem_limit,
        ),
        cost_estimate=pl.CostEstimate(
            flops=flops, transcendentals=0, bytes_accessed=bytes_accessed),
    )(a, a, w0, w1m, w1h)

    return out


def _reference(x, w_depthwise, w_pointwise, kernel_size, padding, stride):
    # pure-JAX reference matching PyTorch Conv1d semantics
    dw = jax.lax.conv_general_dilated(
        x, w_depthwise, window_strides=(stride,), padding=[(padding, padding)],
        feature_group_count=x.shape[1],
        dimension_numbers=("NCH", "OIH", "NCH"))
    pw = jax.lax.conv_general_dilated(
        dw, w_pointwise, window_strides=(1,), padding=[(0, 0)],
        dimension_numbers=("NCH", "OIH", "NCH"))
    return pw


if __name__ == "__main__":
    B, C_in, C_out, T = 2, 4, 8, 64
    key = jax.random.PRNGKey(0)
    kx, kd, kp = jax.random.split(key, 3)

    x = jax.random.normal(kx, (B, C_in, T), dtype=jnp.float32)
    # PyTorch shapes: depthwise weight (nin, 1, K), pointwise weight (nout, nin, 1), bias=False
    w_depthwise = 0.1 * jax.random.normal(kd, (C_in, 1, KERNEL_SIZE), dtype=jnp.float32)
    w_pointwise = 0.1 * jax.random.normal(kp, (C_out, C_in, 1), dtype=jnp.float32)

    out = downsample_layer(x, w_depthwise, w_pointwise)
    out = jax.block_until_ready(out)

    ref = _reference(x, w_depthwise, w_pointwise, KERNEL_SIZE, PADDING, STRIDE)
    assert out.shape == ref.shape, (out.shape, ref.shape)
    err = jnp.max(jnp.abs(out - ref))
    assert jnp.allclose(out, ref, atol=1e-4, rtol=1e-4), f"max abs err {err}"
    print("KERNEL_OK")
</pallas_src>

<mosaic_0001>
module attributes {stable_mosaic.version = 11 : i64} {
  func.func @_fused_dsconv_kernel(%arg0: i32, %arg1: i32, %arg2: memref<1x40x128xf32, #tpu.memory_space<vmem>>, %arg3: memref<1x24x128xf32, #tpu.memory_space<vmem>>, %arg4: memref<8x40xf32, #tpu.memory_space<vmem>>, %arg5: memref<8x40xf32, #tpu.memory_space<vmem>>, %arg6: memref<8x24xf32, #tpu.memory_space<vmem>>, %arg7: memref<1x8x128xf32, #tpu.memory_space<vmem>>) attributes {dimension_semantics = [#tpu.dimension_semantics<parallel>, #tpu.dimension_semantics<parallel>], iteration_bounds = array<i64: 2, 1>, scalar_prefetch = 0 : i64, scratch_operands = 0 : i64, tpu.core_type = #tpu.core_type<tc>, window_params = [{transform_indices = @transform_0, window_bounds = array<i64: 1, 40, 128>}, {transform_indices = @transform_1, window_bounds = array<i64: 1, 24, 128>}, {pipeline_mode = #tpu.pipeline_mode<synchronous>, transform_indices = @transform_2, window_bounds = array<i64: 8, 40>}, {pipeline_mode = #tpu.pipeline_mode<synchronous>, transform_indices = @transform_3, window_bounds = array<i64: 8, 40>}, {pipeline_mode = #tpu.pipeline_mode<synchronous>, transform_indices = @transform_4, window_bounds = array<i64: 8, 24>}, {transform_indices = @transform_5, window_bounds = array<i64: 1, 8, 128>}]} {
    %c0 = arith.constant 0 : index
    %c0_0 = arith.constant 0 : index
    %c0_1 = arith.constant 0 : index
    %0 = vector.load %arg2[%c0, %c0_0, %c0_1] : memref<1x40x128xf32, #tpu.memory_space<vmem>>, vector<1x40x128xf32>
    %1 = vector.shape_cast %0 : vector<1x40x128xf32> to vector<40x128xf32>
    %c0_2 = arith.constant 0 : index
    %c0_3 = arith.constant 0 : index
    %2 = vector.load %arg4[%c0_2, %c0_3] : memref<8x40xf32, #tpu.memory_space<vmem>>, vector<8x40xf32>
    %cst = arith.constant dense<0.000000e+00> : vector<8x128xf32>
    %3 = tpu.matmul %2, %1, %cst {dimension_numbers = #tpu.dot_dimension_numbers<[1], [0], [0], [1], [0, 0, 1, 1], [], []>} : vector<8x40xf32>, vector<40x128xf32>, vector<8x128xf32> -> vector<8x128xf32>
    %c0_4 = arith.constant 0 : index
    %c0_5 = arith.constant 0 : index
    %4 = vector.load %arg5[%c0_4, %c0_5] : memref<8x40xf32, #tpu.memory_space<vmem>>, vector<8x40xf32>
    %cst_6 = arith.constant dense<0.000000e+00> : vector<8x128xf32>
    %5 = tpu.matmul %4, %1, %cst_6 {dimension_numbers = #tpu.dot_dimension_numbers<[1], [0], [0], [1], [0, 0, 1, 1], [], []>} : vector<8x40xf32>, vector<40x128xf32>, vector<8x128xf32> -> vector<8x128xf32>
    %c127_i32 = arith.constant 127 : i32
    %6 = tpu.dynamic_rotate %5 by %c127_i32 dim 1 : vector<8x128xf32>, i32 -> vector<8x128xf32>
    %c0_7 = arith.constant 0 : index
    %c0_8 = arith.constant 0 : index
    %7 = vector.load %arg6[%c0_7, %c0_8] : memref<8x24xf32, #tpu.memory_space<vmem>>, vector<8x24xf32>
    %c0_9 = arith.constant 0 : index
    %c0_10 = arith.constant 0 : index
    %c0_11 = arith.constant 0 : index
    %8 = vector.load %arg3[%c0_9, %c0_10, %c0_11] : memref<1x24x128xf32, #tpu.memory_space<vmem>>, vector<1x24x128xf32>
    %9 = vector.shape_cast %8 : vector<1x24x128xf32> to vector<24x128xf32>
    %cst_12 = arith.constant dense<0.000000e+00> : vector<8x128xf32>
    %10 = tpu.matmul %7, %9, %cst_12 {dimension_numbers = #tpu.dot_dimension_numbers<[1], [0], [0], [1], [0, 0, 1, 1], [], []>} : vector<8x24xf32>, vector<24x128xf32>, vector<8x128xf32> -> vector<8x128xf32>
    %11 = tpu.iota {dimensions = array<i32: 1>} : vector<8x128xi32>
    %c127_i32_13 = arith.constant 127 : i32
    %12 = vector.broadcast %c127_i32_13 : i32 to vector<8x128xi32>
    %13 = arith.cmpi eq, %11, %12 : vector<8x128xi32>
    %14 = vector.extract_strided_slice %10 {offsets = [0, 0], sizes = [8, 1], strides = [1, 1]} : vector<8x128xf32> to vector<8x1xf32>
    %15 = vector.shape_cast %14 : vector<8x1xf32> to vector<8x1xf32>
    %16 = vector.broadcast %15 : vector<8x1xf32> to vector<8x128xf32>
    %17 = arith.select %13, %16, %6 : vector<8x128xi1>, vector<8x128xf32>
    %18 = arith.addf %3, %17 : vector<8x128xf32>
    %c0_14 = arith.constant 0 : index
    %c0_15 = arith.constant 0 : index
    %c0_16 = arith.constant 0 : index
    %19 = vector.load %arg7[%c0_14, %c0_15, %c0_16] : memref<1x8x128xf32, #tpu.memory_space<vmem>>, vector<1x8x128xf32>
    %20 = vector.shape_cast %19 : vector<1x8x128xf32> to vector<8x128xf32>
    %21 = vector.shape_cast %18 : vector<8x128xf32> to vector<1x8x128xf32>
    tpu.vector_store %arg7[%c0_14, %c0_15, %c0_16], %21 {strides = array<i32>} : memref<1x8x128xf32, #tpu.memory_space<vmem>>, vector<1x8x128xf32>,
    return
  }
  func.func @transform_0(%arg0: i32, %arg1: i32) -> (i32, i32, i32) {
    %c0_i32 = arith.constant 0 : i32
    %c0_i32_0 = arith.constant 0 : i32
    return %arg0, %c0_i32, %arg1 : i32, i32, i32
  }
  func.func @transform_1(%arg0: i32, %arg1: i32) -> (i32, i32, i32) {
    %c1_i32 = arith.constant 1 : i32
    %0 = arith.addi %arg1, %c1_i32 : i32
    %c1_i32_0 = arith.constant 1 : i32
    %1 = arith.muli %0, %c1_i32_0 : i32
    %c0_i32 = arith.constant 0 : i32
    %c0_i32_1 = arith.constant 0 : i32
    return %arg0, %c0_i32, %1 : i32, i32, i32
  }
  func.func @transform_2(%arg0: i32, %arg1: i32) -> (i32, i32) {
    %c0_i32 = arith.constant 0 : i32
    %c0_i32_0 = arith.constant 0 : i32
    %c0_i32_1 = arith.constant 0 : i32
    return %c0_i32, %c0_i32_0 : i32, i32
  }
  func.func @transform_3(%arg0: i32, %arg1: i32) -> (i32, i32) {
    %c0_i32 = arith.constant 0 : i32
    %c0_i32_0 = arith.constant 0 : i32
    %c0_i32_1 = arith.constant 0 : i32
    return %c0_i32, %c0_i32_0 : i32, i32
  }
  func.func @transform_4(%arg0: i32, %arg1: i32) -> (i32, i32) {
    %c0_i32 = arith.constant 0 : i32
    %c0_i32_0 = arith.constant 0 : i32
    %c0_i32_1 = arith.constant 0 : i32
    return %c0_i32, %c0_i32_0 : i32, i32
  }
  func.func @transform_5(%arg0: i32, %arg1: i32) -> (i32, i32, i32) {
    %c0_i32 = arith.constant 0 : i32
    %c0_i32_0 = arith.constant 0 : i32
    return %arg0, %c0_i32, %arg1 : i32, i32, i32
  }
}

</mosaic_0001>

<llo_original>
// kernel: tpu_custom_call.1
$region0: #{tpu_custom_call.1}
  #allocation0 [shape = 'u32[]', space=smem, size = 0x4, offset = 0x4, fixed_abs, tag = 'smem constant byte address 0x4 - core index']
  #allocation1 [shape = 'u32[144,128]{1,0:T(1,128)}', space=vmem, size = 0x12000, scoped, tag = 'internal scratch']
  %s0 = inlined_call_operand.hbm [shape: f32[2,40,256], index: 0, kind: input, shape index: {}]
  %s1 = inlined_call_operand.hbm [shape: f32[2,40,256], index: 1, kind: input, shape index: {}]
  %s2 = inlined_call_operand.hbm [shape: f32[8,40], index: 2, kind: input, shape index: {}]
  %s3 = inlined_call_operand.vmem [shape: f32[8,40], index: 3, kind: input, shape index: {}]
  %s4 = inlined_call_operand.hbm [shape: f32[8,24], index: 4, kind: input, shape index: {}]
  %s5 = inlined_call_operand.vmem [shape: f32[2,8,6], index: 5, kind: output, shape index: {}]
  %s6 = sld [smem:[#allocation0]]
  $region69: #{tpu_custom_call.1} parent=0
    _
  %s8 = ssub.s32 1, %s6
  %s9 = scalar_select 0, %s8, %s6
  $region1: #{tpu_custom_call.1} parent=0
    #allocation2 [shape = 'u8[40960]{0}', space=vmem, size = 0xa000, scoped, tag = 'input window, operand 0']
    #allocation3 [shape = 's32[2]{0}', space=sflag, size = 0x8, scoped, tag = 'scoped memory for tpu_custom_call.1']
    #allocation4 [shape = 'u8[24576]{0}', space=vmem, size = 0x6000, scoped, tag = 'input window, operand 1']
    #allocation5 [shape = 's32[2]{0}', space=sflag, size = 0x8, scoped, tag = 'scoped memory for tpu_custom_call.1']
    #allocation6 [shape = 'u8[4096]{0}', space=vmem, size = 0x1000, scoped, tag = 'input window, operand 2, single buffered']
    #allocation7 [shape = 'u8[4096]{0}', space=vmem, size = 0x1000, scoped, tag = 'input window, operand 4, single buffered']
    #allocation8 [shape = 's32[1]{0}', space=sflag, size = 0x4, scoped, tag = 'scoped memory for tpu_custom_call.1']
    %10 = vsyncpa [#allocation3], 0
    %s11 = scalar_lea.sflag [#allocation3], 1
    %12 = vsyncpa %s11, 0
    %13 = vsyncpa [#allocation5], 0
    %s14 = scalar_lea.sflag [#allocation5], 1
    %15 = vsyncpa %s14, 0
    %16 = vsyncpa [#allocation8], 0
    loop: start=0, step=1, limit=4
    $region2: #{tpu_custom_call.1} parent=1 // loop_pre_header
      _
    $region3: #{tpu_custom_call.1} parent=1 // loop_header
      %s18 = sphi 0, %s22
      %p19 = scmp.ge.s32.totalorder %s18, 4
      %s25 = sphi 0, %s37
      %s26 = sphi 0, %s33
      %s27 = sphi 0, %s25
      %s28 = sphi 0, %s26
      %s29 = sphi 0, %s27
      %s30 = sphi 0, %s28
      %s42 = sphi 0, %s44
      %s45 = sphi 0, %s42
      %s46 = sphi 0, %s45
      %s62 = sphi 0, %s46
      %s72 = sphi 0, %s74
      %s75 = sphi 0, %s72
      %s76 = sphi 0, %s75
      %s92 = sphi 0, %s76
      %s96 = sphi 0, %s96
      %s98 = sphi 0, %s96
      %s99 = sphi 0, %s98
      %s113 = sphi 0, %s99
      %s117 = sphi 0, %s117
      %s119 = sphi 0, %s117
      %s120 = sphi 0, %s119
      %s134 = sphi 0, %s120
      %s138 = sphi 0, %s138
      %s140 = sphi 0, %s138
      %s141 = sphi 0, %s140
      %s155 = sphi 0, %s141
      %s163 = sphi 0, %s165
      %s166 = sphi 0, %s163
      %s167 = sphi 0, %s166
      %s183 = sphi 0, %s167
    $region4: #{tpu_custom_call.1} parent=1 // loop_header_branch
      %21 = sbr.rel (%p19) target = $region8
    $region5: #{tpu_custom_call.1} parent=1 // loop_body
      %s23 = ssub.s32 %s18, 1
      %s24 = ssub.s32 %s18, 2
      %s31 = sadd.s32 1, %s26
      %p32 = scmp.ge.s32.totalorder %s31, 1
      %s33 = scalar_select %p32, 0, %s31
      %s34 = sadd.s32 1, %s25
      %s35 = scalar_select %p32, %s34, %s25
      %p36 = scmp.ge.s32.totalorder %s35, 2
      %s37 = scalar_select %p36, 0, %s35
      %s38 = ssub.s32 %s25, %s37
      %s39 = ssub.s32 %s26, %s33
      %s40 = sor.u32 %s38, %s39
      %p41 = scmp.eq.s32.totalorder %s40, 0
      %s43 = sadd.s32 %s42, 1
      %s44 = scalar_select %p41, %s42, %s43
      %p47 = pneg %p41
      %p48 = scmp.eq.s32.totalorder %s18, 1
      %p49 = por %p47, %p48
      %p50 = scmp.ne.s32.totalorder %s42, %s45
      %p51 = scmp.eq.s32.totalorder %s18, 0
      %p52 = por %p50, %p51
      %p53 = scmp.ne.s32.totalorder %s42, %s45
      %p54 = scmp.eq.s32.totalorder %s23, 1
      %p55 = por %p53, %p54
      %p56 = scmp.ne.s32.totalorder %s45, %s46
      %p57 = scmp.eq.s32.totalorder %s23, 0
      %p58 = por %p56, %p57
      %p59 = scmp.ne.s32.totalorder %s45, %s46
      %p60 = scmp.eq.s32.totalorder %s24, 1
      %p61 = por %p59, %p60
      %p63 = scmp.ne.s32.totalorder %s46, %s62
      %p64 = scmp.eq.s32.totalorder %s24, 0
      %p65 = por %p63, %p64
      %s66 = sadd.s32 %s26, 1
      %s67 = sadd.s32 %s33, 1
      %s68 = ssub.s32 %s25, %s37
      %s69 = ssub.s32 %s66, %s67
      %s70 = sor.u32 %s68, %s69
      %p71 = scmp.eq.s32.totalorder %s70, 0
      %s73 = sadd.s32 %s72, 1
      %s74 = scalar_select %p71, %s72, %s73
      %p77 = pneg %p71
      %p78 = scmp.eq.s32.totalorder %s18, 1
      %p79 = por %p77, %p78
      %p80 = scmp.ne.s32.totalorder %s72, %s75
      %p81 = scmp.eq.s32.totalorder %s18, 0
      %p82 = por %p80, %p81
      %p83 = scmp.ne.s32.totalorder %s72, %s75
      %p84 = scmp.eq.s32.totalorder %s23, 1
      %p85 = por %p83, %p84
      %p86 = scmp.ne.s32.totalorder %s75, %s76
      %p87 = scmp.eq.s32.totalorder %s23, 0
      %p88 = por %p86, %p87
      %p89 = scmp.ne.s32.totalorder %s75, %s76
      %p90 = scmp.eq.s32.totalorder %s24, 1
      %p91 = por %p89, %p90
      %p93 = scmp.ne.s32.totalorder %s76, %s92
      %p94 = scmp.eq.s32.totalorder %s24, 0
      %p95 = por %p93, %p94
      %s97 = sadd.s32 %s96, 1
      %p100 = scmp.eq.s32.totalorder %s18, 1
      %p101 = scmp.ne.s32.totalorder %s96, %s98
      %p102 = scmp.eq.s32.totalorder %s18, 0
      %p103 = por %p101, %p102
      %p104 = scmp.ne.s32.totalorder %s96, %s98
      %p105 = scmp.eq.s32.totalorder %s23, 1
      %p106 = por %p104, %p105
      %p107 = scmp.ne.s32.totalorder %s98, %s99
      %p108 = scmp.eq.s32.totalorder %s23, 0
      %p109 = por %p107, %p108
      %p110 = scmp.ne.s32.totalorder %s98, %s99
      %p111 = scmp.eq.s32.totalorder %s24, 1
      %p112 = por %p110, %p111
      %p114 = scmp.ne.s32.totalorder %s99, %s113
      %p115 = scmp.eq.s32.totalorder %s24, 0
      %p116 = por %p114, %p115
      %s118 = sadd.s32 %s117, 1
      %p121 = scmp.eq.s32.totalorder %s18, 1
      %p122 = scmp.ne.s32.totalorder %s117, %s119
      %p123 = scmp.eq.s32.totalorder %s18, 0
      %p124 = por %p122, %p123
      %p125 = scmp.ne.s32.totalorder %s117, %s119
      %p126 = scmp.eq.s32.totalorder %s23, 1
      %p127 = por %p125, %p126
      %p128 = scmp.ne.s32.totalorder %s119, %s120
      %p129 = scmp.eq.s32.totalorder %s23, 0
      %p130 = por %p128, %p129
      %p131 = scmp.ne.s32.totalorder %s119, %s120
      %p132 = scmp.eq.s32.totalorder %s24, 1
      %p133 = por %p131, %p132
      %p135 = scmp.ne.s32.totalorder %s120, %s134
      %p136 = scmp.eq.s32.totalorder %s24, 0
      %p137 = por %p135, %p136
      %s139 = sadd.s32 %s138, 1
      %p142 = scmp.eq.s32.totalorder %s18, 1
      %p143 = scmp.ne.s32.totalorder %s138, %s140
      %p144 = scmp.eq.s32.totalorder %s18, 0
      %p145 = por %p143, %p144
      %p146 = scmp.ne.s32.totalorder %s138, %s140
      %p147 = scmp.eq.s32.totalorder %s23, 1
      %p148 = por %p146, %p147
      %p149 = scmp.ne.s32.totalorder %s140, %s141
      %p150 = scmp.eq.s32.totalorder %s23, 0
      %p151 = por %p149, %p150
      %p152 = scmp.ne.s32.totalorder %s140, %s141
      %p153 = scmp.eq.s32.totalorder %s24, 1
      %p154 = por %p152, %p153
      %p156 = scmp.ne.s32.totalorder %s141, %s155
      %p157 = scmp.eq.s32.totalorder %s24, 0
      %p158 = por %p156, %p157
      %s159 = ssub.s32 %s25, %s37
      %s160 = ssub.s32 %s26, %s33
      %s161 = sor.u32 %s159, %s160
      %p162 = scmp.eq.s32.totalorder %s161, 0
      %s164 = sadd.s32 %s163, 1
      %s165 = scalar_select %p162, %s163, %s164
      %p168 = pneg %p162
      %p169 = scmp.eq.s32.totalorder %s18, 1
      %p170 = por %p168, %p169
      %p171 = scmp.ne.s32.totalorder %s163, %s166
      %p172 = scmp.eq.s32.totalorder %s18, 0
      %p173 = por %p171, %p172
      %p174 = scmp.ne.s32.totalorder %s163, %s166
      %p175 = scmp.eq.s32.totalorder %s23, 1
      %p176 = por %p174, %p175
      %p177 = scmp.ne.s32.totalorder %s166, %s167
      %p178 = scmp.eq.s32.totalorder %s23, 0
      %p179 = por %p177, %p178
      %p180 = scmp.ne.s32.totalorder %s166, %s167
      %p181 = scmp.eq.s32.totalorder %s24, 1
      %p182 = por %p180, %p181
      %p184 = scmp.ne.s32.totalorder %s167, %s183
      %p185 = scmp.eq.s32.totalorder %s24, 0
      %p186 = por %p184, %p185
      %p187 = scmp.le.s32.totalorder 1, %s18
      %p188 = scmp.lt.s32.totalorder %s18, 3
      %p189 = pnand %p187, %p188
      %p190 = pneg %p189
      // Predicated region
      $region9: #{tpu_custom_call.1} parent=5 // pred_check
        _
      $region10: #{tpu_custom_call.1} parent=5 // pred_check_branch
        %192 = sbr.rel (%p189) target = $region12
      $region11: #{tpu_custom_call.1} parent=5 // pred_region
        %s193 = ssub.s32 %s18, 1
        // Predicated region
        $region13: #{tpu_custom_call.1} parent=11 // pred_check
          %p194 = pneg %p109
        $region14: #{tpu_custom_call.1} parent=11 // pred_check_branch
          %196 = sbr.rel (%p194) target = $region16
        $region15: #{tpu_custom_call.1} parent=11 // pred_region
          %s198 = ssub.s32 128, 128
          %199 = vsyncadd [#allocation5], %s198
          %s201 = sshll.u32 [#allocation6], 4
          %s202 = int_to_ptr.vmem [resolvable:$true] %s201
          %204 = dma.hbm_to_vmem [thread:$0]  %s2, 128, %s202, [#allocation5]
        $region16: #{tpu_custom_call.1} parent=11 // pred_fallthru
          _
        // Predicated region
        $region17: #{tpu_custom_call.1} parent=11 // pred_check
          %p205 = pneg %p130
        $region18: #{tpu_custom_call.1} parent=11 // pred_check_branch
          %207 = sbr.rel (%p205) target = $region20
        $region19: #{tpu_custom_call.1} parent=11 // pred_region
          _
        $region20: #{tpu_custom_call.1} parent=11 // pred_fallthru
          _
        // Predicated region
        $region21: #{tpu_custom_call.1} parent=11 // pred_check
          %p208 = pneg %p151
        $region22: #{tpu_custom_call.1} parent=11 // pred_check_branch
          %210 = sbr.rel (%p208) target = $region24
        $region23: #{tpu_custom_call.1} parent=11 // pred_region
          %s212 = ssub.s32 128, 128
          %213 = vsyncadd [#allocation8], %s212
          %s215 = sshll.u32 [#allocation7], 4
          %s216 = int_to_ptr.vmem [resolvable:$true] %s215
          %218 = dma.hbm_to_vmem [thread:$0]  %s4, 128, %s216, [#allocation8]
        $region24: #{tpu_custom_call.1} parent=11 // pred_fallthru
          _
      $region12: #{tpu_custom_call.1} parent=5 // pred_fallthru
        _
      %p219 = scmp.lt.s32.totalorder %s18, 2
      // Predicated region
      $region25: #{tpu_custom_call.1} parent=5 // pred_check
        %p220 = pneg %p219
      $region26: #{tpu_custom_call.1} parent=5 // pred_check_branch
        %222 = sbr.rel (%p220) target = $region28
      $region27: #{tpu_custom_call.1} parent=5 // pred_region
        // Predicated region
        $region29: #{tpu_custom_call.1} parent=27 // pred_check
          %p223 = pneg %p52
        $region30: #{tpu_custom_call.1} parent=27 // pred_check_branch
          %225 = sbr.rel (%p223) target = $region32
        $region31: #{tpu_custom_call.1} parent=27 // pred_region
          %s226 = sand.u32 %s42, 1
          %s227 = scalar_lea.sflag [#allocation3], %s226
          %s228 = sand.u32 %s42, 1
          %s229 = smul.addr %s228, 40
          %s230 = scalar_lea.vmem [#allocation2], %s229
          %s232 = ssub.s32 640, 640
          %233 = vsyncadd %s227, %s232
          %s234 = smul.addr %s25, 10
          %s235 = sadd.s32 %s26, %s234
          %s236 = smul.addr %s235, 128
          %s237 = scalar_lea.hbm %s0, %s236
          %s238 = sshll.u32 %s230, 4
          %s239 = int_to_ptr.vmem [resolvable:$true] %s238
          %244 = dma.hbm_to_vmem [thread:$0]  %s237, 640, %s239, %s227, 256, 128, 8
        $region32: #{tpu_custom_call.1} parent=27 // pred_fallthru
          _
        // Predicated region
        $region33: #{tpu_custom_call.1} parent=27 // pred_check
          %p245 = pneg %p82
        $region34: #{tpu_custom_call.1} parent=27 // pred_check_branch
          %247 = sbr.rel (%p245) target = $region36
        $region35: #{tpu_custom_call.1} parent=27 // pred_region
          %s248 = sand.u32 %s18, 1
          %s249 = scalar_lea.sflag [#allocation5], %s248
          %s250 = sand.u32 %s72, 1
          %s251 = smul.addr %s250, 24
          %s252 = scalar_lea.vmem [#allocation4], %s251
          %s253 = sadd.s32 %s26, 1
          %s255 = ssub.s32 384, 384
          %256 = vsyncadd %s249, %s255
          %s257 = smul.addr %s25, 10
          %s258 = sadd.s32 %s253, %s257
          %s259 = smul.addr %s258, 128
          %s260 = scalar_lea.hbm %s1, %s259
          %s261 = sshll.u32 %s252, 4
          %s262 = int_to_ptr.vmem [resolvable:$true] %s261
          %267 = dma.hbm_to_vmem [thread:$0]  %s260, 384, %s262, %s249, 256, 128, 8
        $region36: #{tpu_custom_call.1} parent=27 // pred_fallthru
          _
      $region28: #{tpu_custom_call.1} parent=5 // pred_fallthru
        _
      %p268 = scmp.le.s32.totalorder 1, %s18
      %p269 = scmp.lt.s32.totalorder %s18, 3
      %p270 = pnand %p268, %p269
      %p271 = pneg %p270
      // Predicated region
      $region37: #{tpu_custom_call.1} parent=5 // pred_check
        _
      $region38: #{tpu_custom_call.1} parent=5 // pred_check_branch
        %273 = sbr.rel (%p270) target = $region40
      $region39: #{tpu_custom_call.1} parent=5 // pred_region
        %s274 = ssub.s32 %s18, 1
        %s275 = sand.u32 %s45, 1
        %s276 = scalar_lea.sflag [#allocation3], %s275
        %s277 = sand.u32 %s45, 1
        %s278 = smul.addr %s277, 40
        %s279 = scalar_lea.vmem [#allocation2], %s278
        // Predicated region
        $region41: #{tpu_custom_call.1} parent=39 // pred_check
          %p280 = pneg %p58
        $region42: #{tpu_custom_call.1} parent=39 // pred_check_branch
          %282 = sbr.rel (%p280) target = $region44
        $region43: #{tpu_custom_call.1} parent=39 // pred_region
          %283 = dma.done %s276, 640
        $region44: #{tpu_custom_call.1} parent=39 // pred_fallthru
          _
        %s284 = sand.u32 %s23, 1
        %s285 = scalar_lea.sflag [#allocation5], %s284
        %s286 = sand.u32 %s75, 1
        %s287 = smul.addr %s286, 24
        %s288 = scalar_lea.vmem [#allocation4], %s287
        // Predicated region
        $region45: #{tpu_custom_call.1} parent=39 // pred_check
          %p289 = pneg %p88
        $region46: #{tpu_custom_call.1} parent=39 // pred_check_branch
          %291 = sbr.rel (%p289) target = $region48
        $region47: #{tpu_custom_call.1} parent=39 // pred_region
          %292 = dma.done %s285, 384
        $region48: #{tpu_custom_call.1} parent=39 // pred_fallthru
          _
        // Predicated region
        $region49: #{tpu_custom_call.1} parent=39 // pred_check
          %p293 = pneg %p109
        $region50: #{tpu_custom_call.1} parent=39 // pred_check_branch
          %295 = sbr.rel (%p293) target = $region52
        $region51: #{tpu_custom_call.1} parent=39 // pred_region
          %296 = dma.done [#allocation5], 128
        $region52: #{tpu_custom_call.1} parent=39 // pred_fallthru
          _
        // Predicated region
        $region53: #{tpu_custom_call.1} parent=39 // pred_check
          %p297 = pneg %p151
        $region54: #{tpu_custom_call.1} parent=39 // pred_check_branch
          %299 = sbr.rel (%p297) target = $region56
        $region55: #{tpu_custom_call.1} parent=39 // pred_region
          %300 = dma.done [#allocation8], 128
        $region56: #{tpu_custom_call.1} parent=39 // pred_fallthru
          _
        %s301 = sand.u32 %s45, 1
        %s302 = scalar_lea.sflag [#allocation3], %s301
        %s303 = sand.u32 %s45, 1
        %s304 = smul.addr %s303, 40
        %s305 = scalar_lea.vmem [#allocation2], %s304
        %p306 = pneg %p58
        %p307 = pneg %p55
        %s308 = sand.u32 %s23, 1
        %s309 = scalar_lea.sflag [#allocation5], %s308
        %s310 = sand.u32 %s75, 1
        %s311 = smul.addr %s310, 24
        %s312 = scalar_lea.vmem [#allocation4], %s311
        %p313 = pneg %p88
        %p314 = pneg %p85
        %p315 = pneg %p109
        %p316 = pneg %p106
        %p317 = pneg %p130
        %p318 = pneg %p127
        %p319 = pneg %p151
        %p320 = pneg %p148
        %p321 = pneg %p179
        %p322 = pneg %p176
        %p323 = scmp.lt.s32.totalorder %s27, 1
        %s324 = scalar_select %p323, %s27, 1
        %p325 = scmp.lt.s32.totalorder %s28, 0
        %s326 = scalar_select %p325, %s28, 0
        %s327 = sadd.s32 %s326, %s324
        %s328 = smul.addr %s327, 8
        %s329 = scalar_lea.vmem %s5, %s328
        %s330 = sadd.s32 %s28, 1
        %p331 = scmp.lt.s32.totalorder %s27, 1
        %s332 = scalar_select %p331, %s27, 1
        %p333 = scmp.lt.s32.totalorder %s28, 0
        %s334 = scalar_select %p333, %s28, 0
        %s335 = sadd.s32 %s334, %s332
        %s336 = smul.addr %s335, 8
        %s337 = scalar_lea.vmem %s5, %s336
        %v338 = vld [vmem:[%s279] sm:$0xff]
        %v339 = vld [vmem:[%s279 + $0x8] sm:$0xff]
        %v340 = vld [vmem:[%s279 + $0x10] sm:$0xff]
        %v341 = vld [vmem:[%s279 + $0x18] sm:$0xff]
        %v342 = vld [vmem:[%s279 + $0x20] sm:$0xff]
        %v343 = vld [vmem:[#allocation6] sm:$0xff]
        %v344 = vld [vmem:[%s3] sm:$0xff]
        %vm345 = vcmask 326656
        %v347 = vsel %vm345, %v344, 0
        %349 = vmatprep.subr.mxu0 0.0
        %350 = vmatpush1.msra.mxu0 %v338
        %351 = vmatprep.subr.mxu0 0.0
        %352 = vmatpush1.msra.mxu0 %v339
        %353 = vmatprep.subr.mxu0 0.0
        %354 = vmatpush1.msra.mxu0 %v340
        %355 = vmatprep.subr.mxu0 0.0
        %356 = vmatpush1.msra.mxu0 %v341
        %357 = vmatprep.subr.mxu0 0.0
        %358 = vmatpush1.msra.mxu0 %v342
        %359 = vmatprep.subr.mxu0 0.0
        %360 = vmatpush1.msra.mxu0 0.0
        %361 = vmatprep.subr.mxu0 0.0
        %362 = vmatpush1.msra.mxu0 0.0
        %363 = vmatprep.subr.mxu0 0.0
        %364 = vmatpush1.msra.mxu0 0.0
        %365 = vmatprep.subr.mxu0 0.0
        %366 = vmatpush1.msra.mxu0 0.0
        %367 = vmatprep.subr.mxu0 0.0
        %368 = vmatpush1.msra.mxu0 0.0
        %369 = vmatprep.subr.mxu0 0.0
        %370 = vmatpush1.msra.mxu0 0.0
        %371 = vmatprep.subr.mxu0 0.0
        %372 = vmatpush1.msra.mxu0 0.0
        %373 = vmatprep.subr.mxu0 0.0
        %374 = vmatpush1.msra.mxu0 0.0
        %375 = vmatprep.subr.mxu0 0.0
        %376 = vmatpush1.msra.mxu0 0.0
        %377 = vmatprep.subr.mxu0 0.0
        %378 = vmatpush1.msra.mxu0 0.0
        %379 = vmatprep.subr.mxu0 0.0
        %380 = vmatpush1.msra.mxu0 0.0
        %381 = vmatprep.subr.mxu0 0.0
        %382 = vmatpush1.msra.mxu0 0.0
        %383 = vmatprep.subr.mxu0 0.0
        %384 = vmatpush1.msra.mxu0 0.0
        %385 = vmatprep.subr.mxu0 0.0
        %386 = vmatpush1.msra.mxu0 0.0
        %387 = vmatprep.subr.mxu0 0.0
        %388 = vmatpush1.msra.mxu0 0.0
        %389 = vmatprep.subr.mxu0 0.0
        %390 = vmatpush1.msra.mxu0 0.0
        %391 = vmatprep.subr.mxu0 0.0
        %392 = vmatpush1.msra.mxu0 0.0
        %393 = vmatprep.subr.mxu0 0.0
        %394 = vmatpush1.msra.mxu0 0.0
        %395 = vmatprep.subr.mxu0 0.0
        %396 = vmatpush1.msra.mxu0 0.0
        %397 = vmatprep.subr.mxu0 0.0
        %398 = vmatpush1.msra.mxu0 0.0
        %399 = vmatprep.subr.mxu0 0.0
        %400 = vmatpush1.msra.mxu0 0.0
        %401 = vmatprep.subr.mxu0 0.0
        %402 = vmatpush1.msra.mxu0 0.0
        %403 = vmatprep.subr.mxu0 0.0
        %404 = vmatpush1.msra.mxu0 0.0
        %405 = vmatprep.subr.mxu0 0.0
        %406 = vmatpush1.msra.mxu0 0.0
        %407 = vmatprep.subr.mxu0 0.0
        %408 = vmatpush1.msra.mxu0 0.0
        %409 = vmatprep.subr.mxu0 0.0
        %410 = vmatpush1.msra.mxu0 0.0
        %411 = vmatprep.subr.mxu0 0.0
        %412 = vmatpush1.msra.mxu0 0.0
        %413 = vmatprep.mubr.f32.mxu0 0.0
        %414 = vmatmul.mubr.f32.gmra.mrb[0].mxu0 %v347
        %v415 = vpop.f32.mrb[0].mxu0
        %v416 = vadd.f32 0.0, %v415
        %v417 = vpop.f32.mrb[0].mxu0
        %418 = vdwg.mxu0
        %419 = vrot.lane.b32.xlu0 %v416, 127
        %v420 = vpop.permute.xlu0 %419
        %v421 = vld [vmem:[#allocation7] sm:$0xff]
        %v422 = vld [vmem:[%s288] sm:$0xff]
        %v423 = vld [vmem:[%s288 + $0x8] sm:$0xff]
        %v424 = vld [vmem:[%s288 + $0x10] sm:$0xff]
        %vm425 = vcmask 195584
        %v427 = vsel %vm425, %v421, 0
        %429 = vmatprep.subr.mxu0 0.0
        %430 = vmatpush1.msra.mxu0 %v422
        %431 = vmatprep.subr.mxu0 0.0
        %432 = vmatpush1.msra.mxu0 %v423
        %433 = vmatprep.subr.mxu0 0.0
        %434 = vmatpush1.msra.mxu0 %v424
        %435 = vmatprep.subr.mxu0 0.0
        %436 = vmatpush1.msra.mxu0 0.0
        %437 = vmatprep.subr.mxu0 0.0
        %438 = vmatpush1.msra.mxu0 0.0
        %439 = vmatprep.subr.mxu0 0.0
        %440 = vmatpush1.msra.mxu0 0.0
        %441 = vmatprep.subr.mxu0 0.0
        %442 = vmatpush1.msra.mxu0 0.0
        %443 = vmatprep.subr.mxu0 0.0
        %444 = vmatpush1.msra.mxu0 0.0
        %445 = vmatprep.subr.mxu0 0.0
        %446 = vmatpush1.msra.mxu0 0.0
        %447 = vmatprep.subr.mxu0 0.0
        %448 = vmatpush1.msra.mxu0 0.0
        %449 = vmatprep.subr.mxu0 0.0
        %450 = vmatpush1.msra.mxu0 0.0
        %451 = vmatprep.subr.mxu0 0.0
        %452 = vmatpush1.msra.mxu0 0.0
        %453 = vmatprep.subr.mxu0 0.0
        %454 = vmatpush1.msra.mxu0 0.0
        %455 = vmatprep.subr.mxu0 0.0
        %456 = vmatpush1.msra.mxu0 0.0
        %457 = vmatprep.subr.mxu0 0.0
        %458 = vmatpush1.msra.mxu0 0.0
        %459 = vmatprep.subr.mxu0 0.0
        %460 = vmatpush1.msra.mxu0 0.0
        %461 = vmatprep.subr.mxu0 0.0
        %462 = vmatpush1.msra.mxu0 0.0
        %463 = vmatprep.subr.mxu0 0.0
        %464 = vmatpush1.msra.mxu0 0.0
        %465 = vmatprep.subr.mxu0 0.0
        %466 = vmatpush1.msra.mxu0 0.0
        %467 = vmatprep.subr.mxu0 0.0
        %468 = vmatpush1.msra.mxu0 0.0
        %469 = vmatprep.subr.mxu0 0.0
        %470 = vmatpush1.msra.mxu0 0.0
        %471 = vmatprep.subr.mxu0 0.0
        %472 = vmatpush1.msra.mxu0 0.0
        %473 = vmatprep.subr.mxu0 0.0
        %474 = vmatpush1.msra.mxu0 0.0
        %475 = vmatprep.subr.mxu0 0.0
        %476 = vmatpush1.msra.mxu0 0.0
        %477 = vmatprep.subr.mxu0 0.0
        %478 = vmatpush1.msra.mxu0 0.0
        %479 = vmatprep.subr.mxu0 0.0
        %480 = vmatpush1.msra.mxu0 0.0
        %481 = vmatprep.subr.mxu0 0.0
        %482 = vmatpush1.msra.mxu0 0.0
        %483 = vmatprep.subr.mxu0 0.0
        %484 = vmatpush1.msra.mxu0 0.0
        %485 = vmatprep.subr.mxu0 0.0
        %486 = vmatpush1.msra.mxu0 0.0
        %487 = vmatprep.subr.mxu0 0.0
        %488 = vmatpush1.msra.mxu0 0.0
        %489 = vmatprep.subr.mxu0 0.0
        %490 = vmatpush1.msra.mxu0 0.0
        %491 = vmatprep.subr.mxu0 0.0
        %492 = vmatpush1.msra.mxu0 0.0
        %493 = vmatprep.mubr.f32.mxu0 0.0
        %494 = vmatmul.mubr.f32.gmra.mrb[0].mxu0 %v427
        %v495 = vpop.f32.mrb[0].mxu0
        %v496 = vadd.f32 0.0, %v495
        %v497 = vpop.f32.mrb[0].mxu0
        %498 = vdwg.mxu0
        %v499 = vlaneseq
        %v500 = vand.u32 %v499, 127
        %vm501 = vcmp.eq.s32.totalorder %v500, 127
        %503 = vset.pattern.permute.xlu0 0
        %504 = vperm.xlu0 %503, %v496
        %v505 = vpop.permute.xlu0 %504
        %v507 = vsel %vm501, %v505, %v420
        %v509 = vsel %vm345, %v343, 0
        %511 = vmatprep.subr.mxu0 0.0
        %512 = vmatpush1.msra.mxu0 %v338
        %513 = vmatprep.subr.mxu0 0.0
        %514 = vmatpush1.msra.mxu0 %v339
        %515 = vmatprep.subr.mxu0 0.0
        %516 = vmatpush1.msra.mxu0 %v340
        %517 = vmatprep.subr.mxu0 0.0
        %518 = vmatpush1.msra.mxu0 %v341
        %519 = vmatprep.subr.mxu0 0.0
        %520 = vmatpush1.msra.mxu0 %v342
        %521 = vmatprep.subr.mxu0 0.0
        %522 = vmatpush1.msra.mxu0 0.0
        %523 = vmatprep.subr.mxu0 0.0
        %524 = vmatpush1.msra.mxu0 0.0
        %525 = vmatprep.subr.mxu0 0.0
        %526 = vmatpush1.msra.mxu0 0.0
        %527 = vmatprep.subr.mxu0 0.0
        %528 = vmatpush1.msra.mxu0 0.0
        %529 = vmatprep.subr.mxu0 0.0
        %530 = vmatpush1.msra.mxu0 0.0
        %531 = vmatprep.subr.mxu0 0.0
        %532 = vmatpush1.msra.mxu0 0.0
        %533 = vmatprep.subr.mxu0 0.0
        %534 = vmatpush1.msra.mxu0 0.0
        %535 = vmatprep.subr.mxu0 0.0
        %536 = vmatpush1.msra.mxu0 0.0
        %537 = vmatprep.subr.mxu0 0.0
        %538 = vmatpush1.msra.mxu0 0.0
        %539 = vmatprep.subr.mxu0 0.0
        %540 = vmatpush1.msra.mxu0 0.0
        %541 = vmatprep.subr.mxu0 0.0
        %542 = vmatpush1.msra.mxu0 0.0
        %543 = vmatprep.subr.mxu0 0.0
        %544 = vmatpush1.msra.mxu0 0.0
        %545 = vmatprep.subr.mxu0 0.0
        %546 = vmatpush1.msra.mxu0 0.0
        %547 = vmatprep.subr.mxu0 0.0
        %548 = vmatpush1.msra.mxu0 0.0
        %549 = vmatprep.subr.mxu0 0.0
        %550 = vmatpush1.msra.mxu0 0.0
        %551 = vmatprep.subr.mxu0 0.0
        %552 = vmatpush1.msra.mxu0 0.0
        %553 = vmatprep.subr.mxu0 0.0
        %554 = vmatpush1.msra.mxu0 0.0
        %555 = vmatprep.subr.mxu0 0.0
        %556 = vmatpush1.msra.mxu0 0.0
        %557 = vmatprep.subr.mxu0 0.0
        %558 = vmatpush1.msra.mxu0 0.0
        %559 = vmatprep.subr.mxu0 0.0
        %560 = vmatpush1.msra.mxu0 0.0
        %561 = vmatprep.subr.mxu0 0.0
        %562 = vmatpush1.msra.mxu0 0.0
        %563 = vmatprep.subr.mxu0 0.0
        %564 = vmatpush1.msra.mxu0 0.0
        %565 = vmatprep.subr.mxu0 0.0
        %566 = vmatpush1.msra.mxu0 0.0
        %567 = vmatprep.subr.mxu0 0.0
        %568 = vmatpush1.msra.mxu0 0.0
        %569 = vmatprep.subr.mxu0 0.0
        %570 = vmatpush1.msra.mxu0 0.0
        %571 = vmatprep.subr.mxu0 0.0
        %572 = vmatpush1.msra.mxu0 0.0
        %573 = vmatprep.subr.mxu0 0.0
        %574 = vmatpush1.msra.mxu0 0.0
        %575 = vmatprep.mubr.f32.mxu0 0.0
        %576 = vmatmul.mubr.f32.gmra.mrb[0].mxu0 %v509
        %v577 = vpop.f32.mrb[0].mxu0
        %v578 = vadd.f32 %v507, %v577
        %v579 = vpop.f32.mrb[0].mxu0
        %580 = vdwg.mxu0
        %581 = vst [vmem:[%s337] sm:$0xff] %v578
        %p582 = scmp.lt.s32.totalorder %s27, 1
        %s583 = scalar_select %p582, %s27, 1
        %p584 = scmp.lt.s32.totalorder %s28, 0
        %s585 = scalar_select %p584, %s28, 0
        %s586 = sadd.s32 %s585, %s583
        %s587 = smul.addr %s586, 8
        %s588 = scalar_lea.vmem %s5, %s587
        // Predicated region
        $region57: #{tpu_custom_call.1} parent=39 // pred_check
          %p589 = pneg %p176
        $region58: #{tpu_custom_call.1} parent=39 // pred_check_branch
          %591 = sbr.rel (%p589) target = $region60
        $region59: #{tpu_custom_call.1} parent=39 // pred_region
          _
        $region60: #{tpu_custom_call.1} parent=39 // pred_fallthru
          _
      $region40: #{tpu_custom_call.1} parent=5 // pred_fallthru
        _
      %p592 = scmp.le.s32.totalorder 2, %s18
      // Predicated region
      $region61: #{tpu_custom_call.1} parent=5 // pred_check
        %p593 = pneg %p592
      $region62: #{tpu_custom_call.1} parent=5 // pred_check_branch
        %595 = sbr.rel (%p593) target = $region64
      $region63: #{tpu_custom_call.1} parent=5 // pred_region
        %s596 = ssub.s32 %s18, 2
        // Predicated region
        $region65: #{tpu_custom_call.1} parent=63 // pred_check
          %p597 = pneg %p182
        $region66: #{tpu_custom_call.1} parent=63 // pred_check_branch
          %599 = sbr.rel (%p597) target = $region68
        $region67: #{tpu_custom_call.1} parent=63 // pred_region
          %p600 = scmp.lt.s32.totalorder %s29, 1
          %s601 = scalar_select %p600, %s29, 1
          %p602 = scmp.lt.s32.totalorder %s30, 0
          %s603 = scalar_select %p602, %s30, 0
          %s604 = sadd.s32 %s603, %s601
          %s605 = smul.addr %s604, 8
          %s606 = scalar_lea.vmem %s5, %s605
        $region68: #{tpu_custom_call.1} parent=63 // pred_fallthru
          _
      $region64: #{tpu_custom_call.1} parent=5 // pred_fallthru
        _
    $region6: #{tpu_custom_call.1} parent=1 // loop_footer
      %s22 = sadd.s32 1, %s18
    $region7: #{tpu_custom_call.1} parent=1 // loop_footer_branch
      %17 = sbr.rel target = $region3
    $region8: #{tpu_custom_call.1} parent=1 // loop_exit
      _
    %607 = vsyncpa [#allocation3], 1
    %s608 = scalar_lea.sflag [#allocation3], 1
    %609 = vsyncpa %s608, 1
    %610 = vsyncpa [#allocation5], 1
    %s611 = scalar_lea.sflag [#allocation5], 1
    %612 = vsyncpa %s611, 1
    %613 = vsyncpa [#allocation8], 1

</llo_original>
